<compile_context>
chip_gen: v6e
topology: v6e:2x2x1
jax: 0.10.0
libtpu: 0.0.40
codegen_flags: <defaults>
</compile_context>

<pallas_src>
import jax
import jax.numpy as jnp
from jax import lax
from jax.experimental import pallas as pl
from jax.experimental.pallas import tpu as pltpu


def _round_up(x: int, m: int) -> int:
    return ((x + m - 1) // m) * m


def _gather_rows(ids_ref, w_ref):
    """One-hot MXU gather: (T,1) ids  x  (V,E) table -> (T,E) rows."""
    ids = ids_ref[...]                                    # (T, 1) int32
    tbl = w_ref[...].astype(jnp.float32)                  # (V, E)
    T = ids.shape[0]
    V = tbl.shape[0]
    onehot = (ids == lax.broadcasted_iota(jnp.int32, (T, V), 1)).astype(jnp.float32)
    return jnp.dot(onehot, tbl, preferred_element_type=jnp.float32)   # (T, E)


def _embed_kernel_nodrop(ids_ref, w_ref, out_ref):
    out_ref[...] = _gather_rows(ids_ref, w_ref).astype(out_ref.dtype)


def _make_embed_kernel_drop(dropout_p: float):
    # Integer threshold: rnd is uniform in [0, 2^24); drop iff rnd < thr.
    thr = int(round(float(dropout_p) * (1 << 24)))
    thr = max(0, min(thr, (1 << 24) - 1))
    scale = 1.0 / (1.0 - float(dropout_p))

    def kernel(ids_ref, w_ref, rnd_ref, out_ref):
        emb = _gather_rows(ids_ref, w_ref)                            # (T, E) f32
        keep = (rnd_ref[...] >= jnp.int32(thr)).astype(jnp.float32)   # Bernoulli(1-p)
        out_ref[...] = (emb * keep * jnp.float32(scale)).astype(out_ref.dtype)

    return kernel


def embedding_layer_forward(indices, weight, *, dropout_p=0.0, training=False,
                            rng_key=None):
    """Pallas equivalent of EmbeddingLayer.forward.

    indices: (B, S) integer token ids
    weight : (V, E) float32 embedding table
    returns: (B, S, E) float32
    """
    B, S = indices.shape
    V, E = weight.shape
    n_tok = B * S

    # Token tile: multiple of 8 sublanes, capped at 256 tokens per grid step.
    tok_tile = min(256, _round_up(n_tok, 8))
    n_pad = _round_up(n_tok, tok_tile)
    num_tiles = n_pad // tok_tile

    # Clamp ids (guards against silent OOB reads) and pad to the tile grid.
    ids = jnp.clip(indices.reshape(n_tok).astype(jnp.int32), 0, V - 1)
    ids = jnp.pad(ids, (0, n_pad - n_tok))
    ids2d = ids.reshape(n_pad, 1)

    ids_spec = pl.BlockSpec((tok_tile, 1), lambda i: (i, 0))
    w_spec = pl.BlockSpec((V, E), lambda i: (0, 0))          # table resident in VMEM
    out_spec = pl.BlockSpec((tok_tile, E), lambda i: (i, 0))
    cparams = pltpu.CompilerParams(dimension_semantics=("parallel",))

    use_dropout = bool(training) and float(dropout_p) > 0.0

    if use_dropout:
        if rng_key is None:
            rng_key = jax.random.PRNGKey(0)
        # Uniform int32 in [0, 2^24) — dropout mask randomness (plain-JAX glue).
        rnd = jax.random.randint(rng_key, (n_pad, E), 0, 1 << 24, dtype=jnp.int32)
        out_pad = pl.pallas_call(
            _make_embed_kernel_drop(float(dropout_p)),
            out_shape=jax.ShapeDtypeStruct((n_pad, E), jnp.float32),
            grid=(num_tiles,),
            in_specs=[ids_spec, w_spec,
                      pl.BlockSpec((tok_tile, E), lambda i: (i, 0))],
            out_specs=out_spec,
            compiler_params=cparams,
        )(ids2d, weight, rnd)
    else:
        # Inference path: no RNG operand plumbed through at all.
        out_pad = pl.pallas_call(
            _embed_kernel_nodrop,
            out_shape=jax.ShapeDtypeStruct((n_pad, E), jnp.float32),
            grid=(num_tiles,),
            in_specs=[ids_spec, w_spec],
            out_specs=out_spec,
            compiler_params=cparams,
        )(ids2d, weight)

    return out_pad[:n_tok].reshape(B, S, E)


if __name__ == "__main__":
    # Module hyper-parameters (small, consistent with the PyTorch module):
    #   input_size (vocab) = 32, emsize = 128, dropout = 0.25
    V, E = 32, 128
    B, S = 2, 8
    dropout_p = 0.25

    key = jax.random.PRNGKey(0)
    k_w, k_ids, k_drop = jax.random.split(key, 3)

    # nn.Embedding default init: N(0, 1)
    weight = jax.random.normal(k_w, (V, E), dtype=jnp.float32)
    indices = jax.random.randint(k_ids, (B, S), 0, V, dtype=jnp.int32)

    # Eval-mode forward (dropout acts as identity, as in torch eval()).
    out = embedding_layer_forward(indices, weight, dropout_p=dropout_p, training=False)
    out = jax.block_until_ready(out)

    ref = jnp.take(weight, indices, axis=0)
    assert out.shape == (B, S, E)
    assert jnp.allclose(out, ref, atol=1e-5), "embedding gather mismatch"

    # Train-mode forward (inverted dropout: keep-prob 1-p, scale 1/(1-p)).
    # TODO(synk): RNG stream differs from torch.nn.Dropout; only the dropout
    # semantics (keep-prob, scaling) match, not the bit-exact mask.
    out_train = embedding_layer_forward(
        indices, weight, dropout_p=dropout_p, training=True, rng_key=k_drop
    )
    out_train = jax.block_until_ready(out_train)
    assert out_train.shape == (B, S, E)

    # Every surviving element must equal ref * 1/(1-p); dropped elements are 0.
    scale = 1.0 / (1.0 - dropout_p)
    kept = out_train != 0.0
    assert jnp.allclose(
        jnp.where(kept, out_train, 0.0),
        jnp.where(kept, ref * scale, 0.0),
        atol=1e-4,
    ), "dropout scaling mismatch"

    print("KERNEL_OK")
</pallas_src>

<mosaic_0001>
module attributes {stable_mosaic.version = 11 : i64} {
  func.func @_embed_kernel_nodrop(%arg0: i32, %arg1: memref<16x1xi32, #tpu.memory_space<vmem>>, %arg2: memref<32x128xf32, #tpu.memory_space<vmem>>, %arg3: memref<16x128xf32, #tpu.memory_space<vmem>>) attributes {dimension_semantics = [#tpu.dimension_semantics<parallel>], iteration_bounds = array<i64: 1>, scalar_prefetch = 0 : i64, scratch_operands = 0 : i64, tpu.core_type = #tpu.core_type<tc>, window_params = [{transform_indices = @transform_0, window_bounds = array<i64: 16, 1>}, {pipeline_mode = #tpu.pipeline_mode<synchronous>, transform_indices = @transform_1, window_bounds = array<i64: 32, 128>}, {transform_indices = @transform_2, window_bounds = array<i64: 16, 128>}]} {
    %c0 = arith.constant 0 : index
    %c0_0 = arith.constant 0 : index
    %0 = vector.load %arg1[%c0, %c0_0] : memref<16x1xi32, #tpu.memory_space<vmem>>, vector<16x1xi32>
    %c0_1 = arith.constant 0 : index
    %c0_2 = arith.constant 0 : index
    %1 = vector.load %arg2[%c0_1, %c0_2] : memref<32x128xf32, #tpu.memory_space<vmem>>, vector<32x128xf32>
    %2 = tpu.iota {dimensions = array<i32: 1>} : vector<16x32xi32>
    %3 = vector.broadcast %0 : vector<16x1xi32> to vector<16x32xi32>
    %4 = arith.cmpi eq, %3, %2 : vector<16x32xi32>
    %5 = arith.extui %4 : vector<16x32xi1> to vector<16x32xi32>
    %6 = arith.sitofp %5 : vector<16x32xi32> to vector<16x32xf32>
    %cst = arith.constant dense<0.000000e+00> : vector<16x128xf32>
    %7 = tpu.matmul %6, %1, %cst {dimension_numbers = #tpu.dot_dimension_numbers<[1], [0], [0], [1], [0, 0, 1, 1], [], []>} : vector<16x32xf32>, vector<32x128xf32>, vector<16x128xf32> -> vector<16x128xf32>
    %c0_3 = arith.constant 0 : index
    %c0_4 = arith.constant 0 : index
    %8 = vector.load %arg3[%c0_3, %c0_4] : memref<16x128xf32, #tpu.memory_space<vmem>>, vector<16x128xf32>
    tpu.vector_store %arg3[%c0_3, %c0_4], %7 {strides = array<i32>} : memref<16x128xf32, #tpu.memory_space<vmem>>, vector<16x128xf32>,
    return
  }
  func.func @transform_0(%arg0: i32) -> (i32, i32) {
    %c0_i32 = arith.constant 0 : i32
    %c0_i32_0 = arith.constant 0 : i32
    return %arg0, %c0_i32 : i32, i32
  }
  func.func @transform_1(%arg0: i32) -> (i32, i32) {
    %c0_i32 = arith.constant 0 : i32
    %c0_i32_0 = arith.constant 0 : i32
    %c0_i32_1 = arith.constant 0 : i32
    return %c0_i32, %c0_i32_0 : i32, i32
  }
  func.func @transform_2(%arg0: i32) -> (i32, i32) {
    %c0_i32 = arith.constant 0 : i32
    %c0_i32_0 = arith.constant 0 : i32
    return %arg0, %c0_i32 : i32, i32
  }
}

</mosaic_0001>

<llo_original>
// kernel: tpu_custom_call.1
$region0: #{tpu_custom_call.1}
  #allocation0 [shape = 'u32[]', space=smem, size = 0x4, offset = 0x4, fixed_abs, tag = 'smem constant byte address 0x4 - core index']
  #allocation1 [shape = 'u32[144,128]{1,0:T(1,128)}', space=vmem, size = 0x12000, scoped, tag = 'internal scratch']
  %s0 = inlined_call_operand.vmem [shape: s32[16,1], index: 0, kind: input, shape index: {}]
  %s1 = inlined_call_operand.hbm [shape: f32[32,128], index: 1, kind: input, shape index: {}]
  %s2 = inlined_call_operand.hbm [shape: f32[16,128], index: 2, kind: output, shape index: {}]
  %s3 = sld [smem:[#allocation0]]
  $region22: #{tpu_custom_call.1} parent=0
    _
  %s5 = ssub.s32 1, %s3
  %s6 = scalar_select 0, %s5, %s3
  $region1: #{tpu_custom_call.1} parent=0
    #allocation2 [shape = 'u8[16384]{0}', space=vmem, size = 0x4000, scoped, tag = 'input window, operand 1, single buffered']
    #allocation3 [shape = 's32[1]{0}', space=sflag, size = 0x4, scoped, tag = 'scoped memory for tpu_custom_call.1']
    #allocation4 [shape = 's32[1]{0}', space=sflag, size = 0x4, scoped, tag = 'scoped memory for tpu_custom_call.1']
    #allocation5 [shape = 'u8[8192]{0}', space=vmem, size = 0x2000, scoped, tag = 'output window, operand 0, single buffered']
    %7 = vsyncpa [#allocation3], 0
    %8 = vsyncpa [#allocation4], 0
    // Predicated region
    $region2: #{tpu_custom_call.1} parent=1 // pred_check
      _
    $region3: #{tpu_custom_call.1} parent=1 // pred_check_branch
      %10 = sbr.rel (0) target = $region5
    $region4: #{tpu_custom_call.1} parent=1 // pred_region
      _
    $region5: #{tpu_custom_call.1} parent=1 // pred_fallthru
      _
    // Predicated region
    $region6: #{tpu_custom_call.1} parent=1 // pred_check
      _
    $region7: #{tpu_custom_call.1} parent=1 // pred_check_branch
      %12 = sbr.rel (0) target = $region9
    $region8: #{tpu_custom_call.1} parent=1 // pred_region
      %s14 = ssub.s32 512, 512
      %15 = vsyncadd [#allocation3], %s14
      %s16 = sshll.u32 [#allocation2], 4
      %s17 = int_to_ptr.vmem [resolvable:$true] %s16
      %22 = dma.hbm_to_vmem [thread:$0]  %s1, 512, %s17, [#allocation3], 128, 128, 8
    $region9: #{tpu_custom_call.1} parent=1 // pred_fallthru
      _
    // Predicated region
    $region10: #{tpu_custom_call.1} parent=1 // pred_check
      _
    $region11: #{tpu_custom_call.1} parent=1 // pred_check_branch
      %24 = sbr.rel (0) target = $region13
    $region12: #{tpu_custom_call.1} parent=1 // pred_region
      %25 = dma.done [#allocation3], 512
    $region13: #{tpu_custom_call.1} parent=1 // pred_fallthru
      _
    %v26 = vld [vmem:[%s0] sm:$0xff]
    %v27 = vld [vmem:[%s0 + $0x8] sm:$0xff]
    %v28 = vld [vmem:[#allocation2] sm:$0xff]
    %v29 = vld [vmem:[#allocation2 + $0x8] sm:$0xff]
    %v30 = vld [vmem:[#allocation2 + $0x10] sm:$0xff]
    %v31 = vld [vmem:[#allocation2 + $0x18] sm:$0xff]
    %v32 = vlaneseq
    %v33 = vand.u32 %v32, 127
    %34 = vset.pattern.permute.xlu0 0
    %35 = vperm.xlu0 %34, %v26
    %v36 = vpop.permute.xlu0 %35
    %37 = vset.pattern.permute.xlu0 0
    %38 = vperm.xlu0 %37, %v27
    %v39 = vpop.permute.xlu0 %38
    %vm40 = vcmp.eq.s32.totalorder %v36, %v33
    %vm41 = vcmp.eq.s32.totalorder %v39, %v33
    %v42 = vsel %vm40, 1, 0
    %v43 = vsel %vm41, 1, 0
    %v44 = vcvt.s32.f32 %v42
    %v45 = vcvt.s32.f32 %v43
    %vm46 = vcmask 261120
    %v48 = vsel %vm46, %v44, 0
    %v51 = vsel %vm46, %v45, 0
    %53 = vmatprep.subr.mxu0 0.0
    %54 = vmatpush1.msra.mxu0 0.0
    %55 = vmatprep.subr.mxu0 0.0
    %56 = vmatpush1.msra.mxu0 0.0
    %57 = vmatprep.subr.mxu0 0.0
    %58 = vmatpush1.msra.mxu0 0.0
    %59 = vmatprep.subr.mxu0 0.0
    %60 = vmatpush1.msra.mxu0 0.0
    %61 = vmatprep.subr.mxu0 0.0
    %62 = vmatpush1.msra.mxu0 0.0
    %63 = vmatprep.subr.mxu0 0.0
    %64 = vmatpush1.msra.mxu0 0.0
    %65 = vmatprep.subr.mxu0 0.0
    %66 = vmatpush1.msra.mxu0 0.0
    %67 = vmatprep.subr.mxu0 0.0
    %68 = vmatpush1.msra.mxu0 0.0
    %69 = vmatprep.subr.mxu0 0.0
    %70 = vmatpush1.msra.mxu0 0.0
    %71 = vmatprep.subr.mxu0 0.0
    %72 = vmatpush1.msra.mxu0 0.0
    %73 = vmatprep.subr.mxu0 0.0
    %74 = vmatpush1.msra.mxu0 0.0
    %75 = vmatprep.subr.mxu0 0.0
    %76 = vmatpush1.msra.mxu0 0.0
    %77 = vmatprep.subr.mxu0 0.0
    %78 = vmatpush1.msra.mxu0 %v31
    %79 = vmatprep.subr.mxu0 0.0
    %80 = vmatpush1.msra.mxu0 %v30
    %81 = vmatprep.subr.mxu0 0.0
    %82 = vmatpush1.msra.mxu0 %v29
    %83 = vmatprep.subr.mxu0 0.0
    %84 = vmatpush1.msra.mxu0 %v28
    %85 = vmatprep.subr.mxu0 0.0
    %86 = vmatpush2.msra.mxu0 0.0
    %87 = vmatprep.subr.mxu0 0.0
    %88 = vmatpush2.msra.mxu0 0.0
    %89 = vmatprep.subr.mxu0 0.0
    %90 = vmatpush2.msra.mxu0 0.0
    %91 = vmatprep.subr.mxu0 0.0
    %92 = vmatpush2.msra.mxu0 0.0
    %93 = vmatprep.subr.mxu0 0.0
    %94 = vmatpush2.msra.mxu0 0.0
    %95 = vmatprep.subr.mxu0 0.0
    %96 = vmatpush2.msra.mxu0 0.0
    %97 = vmatprep.subr.mxu0 0.0
    %98 = vmatpush2.msra.mxu0 0.0
    %99 = vmatprep.subr.mxu0 0.0
    %100 = vmatpush2.msra.mxu0 0.0
    %101 = vmatprep.subr.mxu0 0.0
    %102 = vmatpush2.msra.mxu0 0.0
    %103 = vmatprep.subr.mxu0 0.0
    %104 = vmatpush2.msra.mxu0 0.0
    %105 = vmatprep.subr.mxu0 0.0
    %106 = vmatpush2.msra.mxu0 0.0
    %107 = vmatprep.subr.mxu0 0.0
    %108 = vmatpush2.msra.mxu0 0.0
    %109 = vmatprep.subr.mxu0 0.0
    %110 = vmatpush2.msra.mxu0 0.0
    %111 = vmatprep.subr.mxu0 0.0
    %112 = vmatpush2.msra.mxu0 0.0
    %113 = vmatprep.subr.mxu0 0.0
    %114 = vmatpush2.msra.mxu0 0.0
    %115 = vmatprep.subr.mxu0 0.0
    %116 = vmatpush2.msra.mxu0 0.0
    %117 = vmatprep.mubr.f32.mxu0 0.0
    %118 = vmatmul.mubr.f32.gmra.mxu0 %v48
    %v119 = vpop.f32.mrf.mxu0
    %v120 = vadd.f32 0.0, %v119
    %v121 = vpop.f32.mrf.mxu0
    %122 = vmatprep.mubr.f32.mxu0 0.0
    %123 = vmatmul.mubr.f32.gmra.mxu0 %v51
    %v124 = vpop.f32.mrf.mxu0
    %v125 = vadd.f32 0.0, %v124
    %v126 = vpop.f32.mrf.mxu0
    %127 = vdwg.mxu0
    %128 = vst [vmem:[#allocation5] sm:$0xff] %v120
    %129 = vst [vmem:[#allocation5 + $0x8] sm:$0xff] %v125
    // Predicated region
    $region14: #{tpu_custom_call.1} parent=1 // pred_check
      _
    $region15: #{tpu_custom_call.1} parent=1 // pred_check_branch
      %131 = sbr.rel (0) target = $region17
    $region16: #{tpu_custom_call.1} parent=1 // pred_region
      %s133 = ssub.s32 256, 256
      %134 = vsyncadd [#allocation4], %s133
      %s135 = sshll.u32 [#allocation5], 4
      %s136 = int_to_ptr.vmem [resolvable:$true] %s135
      %141 = dma.vmem_to_hbm [thread:$0]  %s136, 256, %s2, [#allocation4], 128, 128, 8
    $region17: #{tpu_custom_call.1} parent=1 // pred_fallthru
      _
    // Predicated region
    $region18: #{tpu_custom_call.1} parent=1 // pred_check
      _
    $region19: #{tpu_custom_call.1} parent=1 // pred_check_branch
      %143 = sbr.rel (0) target = $region21
    $region20: #{tpu_custom_call.1} parent=1 // pred_region
      %144 = dma.done [#allocation4], 256
    $region21: #{tpu_custom_call.1} parent=1 // pred_fallthru
      _
    %145 = vsyncpa [#allocation3], 1
    %146 = vsyncpa [#allocation4], 1

</llo_original>
